<compile_context>
chip_gen: v6e
topology: v6e:2x2x1
jax: 0.10.0
libtpu: 0.0.40
codegen_flags: <defaults>
</compile_context>

<pallas_src>
import math

import jax
import jax.numpy as jnp
from jax import lax
from jax.experimental import pallas as pl
from jax.experimental.pallas import tpu as pltpu

_HALF_LOG_2PI = 0.5 * math.log(2.0 * math.pi)
_LANE = 128            # lane-dense output / hidden-slice width
_H1 = 128              # layer-1 hidden per net
_H2 = 64               # layer-2 hidden per net
_PACK_W = 2 * _H1      # 256: fused (actor|critic) layer-1 width
_TB_MAX_1TC = 2048     # max batch-tile rows on single-TC chips (v5e/v6e)
_TB_MAX_2TC = 512      # max batch-tile rows on 2-TC chips (v7x)
_MIN_SPLIT_ROWS = 256  # don't split tiny batches across TCs


def _round_up(x, m):
    return ((x + m - 1) // m) * m


def _cdiv(a, b):
    return (a + b - 1) // b


# ----------------------------------------------------------------------------
# Pallas kernel: fused actor+critic forward, one batch tile per grid step
# ----------------------------------------------------------------------------
def _make_kernel(s_pad, action_size):
    r23 = s_pad                 # layer-2 rows (256, cols 0..127) / layer-3 (128, cols 128..255)
    rb = s_pad + _PACK_W        # bias / stds rows

    def kernel(states_ref, noise_ref, params_ref, out_ref):
        f32 = jnp.float32
        cdtype = params_ref.dtype                                 # f32 or bf16 compute

        x = states_ref[...].astype(cdtype)                        # (TB, s_pad)
        noise = noise_ref[...]                                    # (TB, 128) f32

        # static, tile-aligned views of the single packed parameter buffer
        w1 = params_ref[0:s_pad, :]                               # (s_pad, 256)
        w2 = params_ref[r23:r23 + _PACK_W, 0:_LANE]               # (256, 128)
        w3 = params_ref[r23:r23 + _LANE, _LANE:_PACK_W]           # (128, 128)
        b1 = params_ref[rb + 0:rb + 1, :].astype(f32)             # (1, 256)
        b2 = params_ref[rb + 1:rb + 2, 0:_LANE].astype(f32)       # (1, 128)
        b3 = params_ref[rb + 2:rb + 3, 0:_LANE].astype(f32)       # (1, 128)
        stds_raw = params_ref[rb + 3:rb + 4, 0:_LANE].astype(f32)  # (1, 128)

        # fused layer 1: lanes 0..127 actor, 128..255 critic
        h = jnp.dot(x, w1, preferred_element_type=f32) + b1       # (TB, 256)
        h = jnp.maximum(h, 0.0).astype(cdtype)
        # narrowed block-diagonal layer 2: lanes 0..63 actor, 64..127 critic
        h = jnp.dot(h, w2, preferred_element_type=f32) + b2       # (TB, 128)
        h = jnp.maximum(h, 0.0).astype(cdtype)
        # narrowed layer 3: lanes 0..A-1 actor head, lane A+1 critic value
        y = jnp.dot(h, w3, preferred_element_type=f32) + b3       # (TB, 128)

        # numerically stable softplus(actor_stds) in f32
        stds = jnp.maximum(stds_raw, 0.0) + jnp.log1p(jnp.exp(-jnp.abs(stds_raw)))

        means = jnp.tanh(y)                                       # only lanes < A matter
        actions = means + stds * noise                            # (TB, 128)

        lane = lax.broadcasted_iota(jnp.int32, y.shape, 1)        # (TB, 128)
        valid = lane < action_size

        # Normal(means, stds).log_prob(means + stds*noise)
        #   == -0.5*noise^2 - log(stds) - 0.5*log(2*pi)
        logp_terms = jnp.where(
            valid, -0.5 * noise * noise - jnp.log(stds) - _HALF_LOG_2PI, 0.0)
        logp = jnp.sum(logp_terms, axis=-1, keepdims=True)        # (TB, 1)

        # lane-dense output slab: [actions(0..A-1) | logp(A) | value(A+1) | 0...]
        out_ref[...] = jnp.where(valid, actions,
                                 jnp.where(lane == action_size, logp, y))

    return kernel


# ----------------------------------------------------------------------------
# Tiling: balanced tiles, 2-TC aware
# ----------------------------------------------------------------------------
def _choose_tiling(batch):
    try:
        kind = jax.devices()[0].device_kind.lower()
    except Exception:  # pragma: no cover
        kind = ""
    single_tc = ("v5" in kind) or ("v6" in kind)
    tb_max = _TB_MAX_1TC if single_tc else _TB_MAX_2TC

    b8 = _round_up(max(batch, 8), 8)
    grid = _cdiv(b8, tb_max)
    if not single_tc:
        # two TensorCores: keep an even number (>=2) of grid steps for large B
        if grid == 1 and b8 >= 2 * _MIN_SPLIT_ROWS:
            grid = 2
        elif grid > 1 and grid % 2 == 1:
            grid += 1
    tb = _round_up(_cdiv(b8, grid), 8)
    grid = _cdiv(batch, tb)          # no fully-padded trailing tiles
    return tb, grid


# ----------------------------------------------------------------------------
# Wrapper
# ----------------------------------------------------------------------------
def policy_a2c_forward(states, packed_params, noise, *, action_size):
    B, S = states.shape
    A = action_size
    assert A <= 126, "output layout requires action_size <= 126"
    p_rows = packed_params.shape[0]
    s_pad = p_rows - _PACK_W - 8
    assert s_pad >= S, "packed params were built for a smaller state size"

    tb, grid = _choose_tiling(B)

    # Lane-only padding (no batch-row padding; partial last block handles rows).
    states_p = jnp.pad(states.astype(jnp.float32), ((0, 0), (0, s_pad - S)))
    noise_p = jnp.pad(noise.astype(jnp.float32), ((0, 0), (0, _LANE - A)))

    itemsize = jnp.dtype(packed_params.dtype).itemsize
    footprint = (2 * tb * (s_pad + 2 * _LANE) * 4        # states+noise+out tiles (dbl-buffered)
                 + 2 * p_rows * _PACK_W * itemsize       # resident packed params
                 + 4 * tb * _PACK_W * 4)                 # intermediates headroom
    vmem_bytes = int(min(max(footprint + (4 << 20), 16 << 20), 48 << 20))

    out = pl.pallas_call(
        _make_kernel(s_pad, A),
        out_shape=jax.ShapeDtypeStruct((B, _LANE), jnp.float32),
        grid=(grid,),
        in_specs=[
            pl.BlockSpec((tb, s_pad), lambda i: (i, 0)),
            pl.BlockSpec((tb, _LANE), lambda i: (i, 0)),
            # constant index_map -> fetched once, stays resident across steps
            pl.BlockSpec((p_rows, _PACK_W), lambda i: (0, 0)),
        ],
        out_specs=pl.BlockSpec((tb, _LANE), lambda i: (i, 0)),
        compiler_params=pltpu.CompilerParams(
            dimension_semantics=("parallel",),
            vmem_limit_bytes=vmem_bytes,
        ),
    )(states_p, noise_p, packed_params)

    return {
        "actions": out[:, 0:A],
        "action_log_probs": out[:, A:A + 1],
        "critic_values": out[:, A + 1:A + 2],
    }


# ----------------------------------------------------------------------------
# Parameter init (mirrors init_orth(nn.Linear(...))) and one-time packing
# ----------------------------------------------------------------------------
def _orthogonal(key, in_dim, out_dim):
    a = jax.random.normal(key, (max(in_dim, out_dim), min(in_dim, out_dim)),
                          dtype=jnp.float32)
    q, r = jnp.linalg.qr(a)
    q = q * jnp.sign(jnp.diagonal(r))[None, :]
    if in_dim < out_dim:
        q = q.T
    return q[:in_dim, :out_dim].astype(jnp.float32)


def init_params(key, state_size, action_size):
    ks = jax.random.split(key, 6)
    return {
        # actor: state -> 128 -> 64 -> action_size
        "aw1": _orthogonal(ks[0], state_size, _H1), "ab1": jnp.zeros((1, _H1), jnp.float32),
        "aw2": _orthogonal(ks[1], _H1, _H2),        "ab2": jnp.zeros((1, _H2), jnp.float32),
        "aw3": _orthogonal(ks[2], _H2, action_size),
        "ab3": jnp.zeros((1, action_size), jnp.float32),
        "stds": jnp.zeros((1, action_size), jnp.float32),
        # critic: state -> 128 -> 64 -> 1
        "cw1": _orthogonal(ks[3], state_size, _H1), "cb1": jnp.zeros((1, _H1), jnp.float32),
        "cw2": _orthogonal(ks[4], _H1, _H2),        "cb2": jnp.zeros((1, _H2), jnp.float32),
        "cw3": _orthogonal(ks[5], _H2, 1),          "cb3": jnp.zeros((1, 1), jnp.float32),
    }


def pack_params(params, state_size, action_size, dtype=jnp.float32):
    """Pack all weights/biases/stds into one (s_pad + 264, 256) buffer.

    Rows [0, s_pad)          cols 0..255 : layer-1  [aw1 | cw1]
    Rows [s_pad, s_pad+256)  cols 0..127 : layer-2 block-diag  aw2 / cw2
    Rows [s_pad, s_pad+128)  cols 128..255 : layer-3  aw3 -> 0..A-1, cw3 -> A+1
    Rows [s_pad+256, +264)               : biases (b1, b2, b3) and actor stds
    """
    S, A = state_size, action_size
    assert A <= 126
    s_pad = _round_up(max(S, 16), 16)      # 16-aligned so bf16 views stay tile-aligned
    p_rows = s_pad + _PACK_W + 8
    P = jnp.zeros((p_rows, _PACK_W), jnp.float32)
    # layer 1: [aw1 | cw1]
    P = P.at[0:S, 0:_H1].set(params["aw1"])
    P = P.at[0:S, _H1:2 * _H1].set(params["cw1"])
    # layer 2: block-diagonal in the left 128 columns
    r2 = s_pad
    P = P.at[r2:r2 + _H1, 0:_H2].set(params["aw2"])
    P = P.at[r2 + _H1:r2 + 2 * _H1, _H2:2 * _H2].set(params["cw2"])
    # layer 3: packed into the right 128 columns of the first 128 layer-2 rows
    P = P.at[r2:r2 + _H2, _H1:_H1 + A].set(params["aw3"])
    P = P.at[r2 + _H2:r2 + 2 * _H2, _H1 + A + 1].set(params["cw3"][:, 0])
    # bias / stds block
    rb = s_pad + _PACK_W
    P = P.at[rb + 0, 0:_H1].set(params["ab1"][0])
    P = P.at[rb + 0, _H1:2 * _H1].set(params["cb1"][0])
    P = P.at[rb + 1, 0:_H2].set(params["ab2"][0])
    P = P.at[rb + 1, _H2:2 * _H2].set(params["cb2"][0])
    P = P.at[rb + 2, 0:A].set(params["ab3"][0])
    P = P.at[rb + 2, A + 1].set(params["cb3"][0, 0])
    P = P.at[rb + 3, 0:A].set(params["stds"][0])
    return P.astype(dtype)


if __name__ == "__main__":
    state_size, action_size, batch = 16, 4, 8

    root = jax.random.PRNGKey(0)
    k_params, k_states, k_noise = jax.random.split(root, 3)

    params = init_params(k_params, state_size, action_size)
    packed_f32 = pack_params(params, state_size, action_size)          # built once
    states = jax.random.normal(k_states, (batch, state_size), dtype=jnp.float32)
    noise = jax.random.normal(k_noise, (batch, action_size), dtype=jnp.float32)

    out = policy_a2c_forward(states, packed_f32, noise, action_size=action_size)
    jax.block_until_ready(out)

    assert out["actions"].shape == (batch, action_size)
    assert out["action_log_probs"].shape == (batch, 1)
    assert out["critic_values"].shape == (batch, 1)

    # Pure-JAX reference (unfused, original formulation)
    def ref(states, p, noise):
        h = jnp.maximum(states @ p["aw1"] + p["ab1"], 0.0)
        h = jnp.maximum(h @ p["aw2"] + p["ab2"], 0.0)
        means = jnp.tanh(h @ p["aw3"] + p["ab3"])
        stds = jax.nn.softplus(p["stds"])
        actions = means + stds * noise
        lp = (-((actions - means) ** 2) / (2 * stds * stds)
              - jnp.log(stds) - 0.5 * jnp.log(2 * jnp.pi)).sum(-1, keepdims=True)
        c = jnp.maximum(states @ p["cw1"] + p["cb1"], 0.0)
        c = jnp.maximum(c @ p["cw2"] + p["cb2"], 0.0)
        v = c @ p["cw3"] + p["cb3"]
        return actions, lp, v

    ra, rl, rv = ref(states, params, noise)
    assert jnp.allclose(out["actions"], ra, atol=1e-4)
    assert jnp.allclose(out["action_log_probs"], rl, atol=1e-4)
    assert jnp.allclose(out["critic_values"], rv, atol=1e-4)

    # bf16 compute path (review item 8): bf16 weights/activations on the MXU,
    # f32 accumulation and f32 tanh/softplus/log-prob math.  Looser tolerance
    # for the matmul-dependent outputs; log_prob is matmul-independent.
    packed_bf16 = pack_params(params, state_size, action_size, dtype=jnp.bfloat16)
    out_bf16 = policy_a2c_forward(states, packed_bf16, noise, action_size=action_size)
    jax.block_until_ready(out_bf16)
    assert jnp.allclose(out_bf16["actions"], ra, atol=1e-1, rtol=1e-1)
    assert jnp.allclose(out_bf16["action_log_probs"], rl, atol=1e-4)
    assert jnp.allclose(out_bf16["critic_values"], rv, atol=1e-1, rtol=1e-1)

    print("KERNEL_OK")
</pallas_src>

<mosaic_0001>
module attributes {stable_mosaic.version = 11 : i64} {
  func.func @kernel(%arg0: i32, %arg1: memref<8x16xf32, #tpu.memory_space<vmem>>, %arg2: memref<8x128xf32, #tpu.memory_space<vmem>>, %arg3: memref<280x256xf32, #tpu.memory_space<vmem>>, %arg4: memref<8x128xf32, #tpu.memory_space<vmem>>) attributes {dimension_semantics = [#tpu.dimension_semantics<parallel>], iteration_bounds = array<i64: 1>, scalar_prefetch = 0 : i64, scratch_operands = 0 : i64, tpu.core_type = #tpu.core_type<tc>, window_params = [{transform_indices = @transform_0, window_bounds = array<i64: 8, 16>}, {transform_indices = @transform_1, window_bounds = array<i64: 8, 128>}, {pipeline_mode = #tpu.pipeline_mode<synchronous>, transform_indices = @transform_2, window_bounds = array<i64: 280, 256>}, {transform_indices = @transform_3, window_bounds = array<i64: 8, 128>}]} {
    %c0 = arith.constant 0 : index
    %c0_0 = arith.constant 0 : index
    %0 = vector.load %arg1[%c0, %c0_0] : memref<8x16xf32, #tpu.memory_space<vmem>>, vector<8x16xf32>
    %c0_1 = arith.constant 0 : index
    %c0_2 = arith.constant 0 : index
    %1 = vector.load %arg2[%c0_1, %c0_2] : memref<8x128xf32, #tpu.memory_space<vmem>>, vector<8x128xf32>
    %c0_3 = arith.constant 0 : index
    %c0_4 = arith.constant 0 : index
    %2 = vector.load %arg3[%c0_3, %c0_4] : memref<280x256xf32, #tpu.memory_space<vmem>>, vector<16x256xf32>
    %c16 = arith.constant 16 : index
    %c0_5 = arith.constant 0 : index
    %3 = vector.load %arg3[%c16, %c0_5] : memref<280x256xf32, #tpu.memory_space<vmem>>, vector<256x128xf32>
    %c16_6 = arith.constant 16 : index
    %c128 = arith.constant 128 : index
    %4 = vector.load %arg3[%c16_6, %c128] : memref<280x256xf32, #tpu.memory_space<vmem>>, vector<128x128xf32>
    %c272 = arith.constant 272 : index
    %c0_7 = arith.constant 0 : index
    %5 = vector.load %arg3[%c272, %c0_7] : memref<280x256xf32, #tpu.memory_space<vmem>>, vector<1x256xf32>
    %c273 = arith.constant 273 : index
    %c0_8 = arith.constant 0 : index
    %6 = vector.load %arg3[%c273, %c0_8] : memref<280x256xf32, #tpu.memory_space<vmem>>, vector<1x128xf32>
    %c274 = arith.constant 274 : index
    %c0_9 = arith.constant 0 : index
    %7 = vector.load %arg3[%c274, %c0_9] : memref<280x256xf32, #tpu.memory_space<vmem>>, vector<1x128xf32>
    %c275 = arith.constant 275 : index
    %c0_10 = arith.constant 0 : index
    %8 = vector.load %arg3[%c275, %c0_10] : memref<280x256xf32, #tpu.memory_space<vmem>>, vector<1x128xf32>
    %cst = arith.constant dense<0.000000e+00> : vector<8x256xf32>
    %9 = tpu.matmul %0, %2, %cst {dimension_numbers = #tpu.dot_dimension_numbers<[1], [0], [0], [1], [0, 0, 1, 1], [], []>} : vector<8x16xf32>, vector<16x256xf32>, vector<8x256xf32> -> vector<8x256xf32>
    %10 = vector.broadcast %5 : vector<1x256xf32> to vector<8x256xf32>
    %11 = arith.addf %9, %10 : vector<8x256xf32>
    %cst_11 = arith.constant 0.000000e+00 : f32
    %12 = vector.broadcast %cst_11 : f32 to vector<8x256xf32>
    %13 = arith.maximumf %11, %12 : vector<8x256xf32>
    %cst_12 = arith.constant dense<0.000000e+00> : vector<8x128xf32>
    %14 = tpu.matmul %13, %3, %cst_12 {dimension_numbers = #tpu.dot_dimension_numbers<[1], [0], [0], [1], [0, 0, 1, 1], [], []>} : vector<8x256xf32>, vector<256x128xf32>, vector<8x128xf32> -> vector<8x128xf32>
    %15 = vector.broadcast %6 : vector<1x128xf32> to vector<8x128xf32>
    %16 = arith.addf %14, %15 : vector<8x128xf32>
    %cst_13 = arith.constant 0.000000e+00 : f32
    %17 = vector.broadcast %cst_13 : f32 to vector<8x128xf32>
    %18 = arith.maximumf %16, %17 : vector<8x128xf32>
    %cst_14 = arith.constant dense<0.000000e+00> : vector<8x128xf32>
    %19 = tpu.matmul %18, %4, %cst_14 {dimension_numbers = #tpu.dot_dimension_numbers<[1], [0], [0], [1], [0, 0, 1, 1], [], []>} : vector<8x128xf32>, vector<128x128xf32>, vector<8x128xf32> -> vector<8x128xf32>
    %20 = vector.broadcast %7 : vector<1x128xf32> to vector<8x128xf32>
    %21 = arith.addf %19, %20 : vector<8x128xf32>
    %cst_15 = arith.constant 0.000000e+00 : f32
    %22 = vector.broadcast %cst_15 : f32 to vector<1x128xf32>
    %23 = arith.maximumf %8, %22 : vector<1x128xf32>
    %24 = math.absf %8 : vector<1x128xf32>
    %cst_16 = arith.constant 0.000000e+00 : f32
    %25 = vector.broadcast %cst_16 : f32 to vector<1x128xf32>
    %26 = arith.subf %25, %24 : vector<1x128xf32>
    %27 = math.exp %26 : vector<1x128xf32>
    %28 = math.log1p %27 : vector<1x128xf32>
    %29 = arith.addf %23, %28 : vector<1x128xf32>
    %30 = math.tanh %21 : vector<8x128xf32>
    %31 = vector.broadcast %29 : vector<1x128xf32> to vector<8x128xf32>
    %32 = arith.mulf %31, %1 : vector<8x128xf32>
    %33 = arith.addf %30, %32 : vector<8x128xf32>
    %34 = tpu.iota {dimensions = array<i32: 1>} : vector<8x128xi32>
    %c4_i32 = arith.constant 4 : i32
    %35 = vector.broadcast %c4_i32 : i32 to vector<8x128xi32>
    %36 = arith.cmpi slt, %34, %35 : vector<8x128xi32>
    %cst_17 = arith.constant -5.000000e-01 : f32
    %37 = vector.broadcast %cst_17 : f32 to vector<8x128xf32>
    %38 = arith.mulf %37, %1 : vector<8x128xf32>
    %39 = arith.mulf %38, %1 : vector<8x128xf32>
    %40 = math.log %29 : vector<1x128xf32>
    %41 = vector.broadcast %40 : vector<1x128xf32> to vector<8x128xf32>
    %42 = arith.subf %39, %41 : vector<8x128xf32>
    %cst_18 = arith.constant 0.918938517 : f32
    %43 = vector.broadcast %cst_18 : f32 to vector<8x128xf32>
    %44 = arith.subf %42, %43 : vector<8x128xf32>
    %cst_19 = arith.constant 0.000000e+00 : f32
    %45 = vector.broadcast %cst_19 : f32 to vector<8x128xf32>
    %46 = arith.select %36, %44, %45 : vector<8x128xi1>, vector<8x128xf32>
    %cst_20 = arith.constant dense<0.000000e+00> : vector<8xf32>
    %47 = vector.multi_reduction <add>, %46, %cst_20 [1] : vector<8x128xf32> to vector<8xf32>
    %48 = vector.shape_cast %47 : vector<8xf32> to vector<8x1xf32>
    %c4_i32_21 = arith.constant 4 : i32
    %49 = vector.broadcast %c4_i32_21 : i32 to vector<8x128xi32>
    %50 = arith.cmpi eq, %34, %49 : vector<8x128xi32>
    %51 = vector.shape_cast %48 : vector<8x1xf32> to vector<8x1xf32>
    %52 = vector.broadcast %51 : vector<8x1xf32> to vector<8x128xf32>
    %53 = arith.select %50, %52, %21 : vector<8x128xi1>, vector<8x128xf32>
    %54 = arith.select %36, %33, %53 : vector<8x128xi1>, vector<8x128xf32>
    %c0_22 = arith.constant 0 : index
    %c0_23 = arith.constant 0 : index
    %55 = vector.load %arg4[%c0_22, %c0_23] : memref<8x128xf32, #tpu.memory_space<vmem>>, vector<8x128xf32>
    tpu.vector_store %arg4[%c0_22, %c0_23], %54 {strides = array<i32>} : memref<8x128xf32, #tpu.memory_space<vmem>>, vector<8x128xf32>,
    return
  }
  func.func @transform_0(%arg0: i32) -> (i32, i32) {
    %c0_i32 = arith.constant 0 : i32
    %c0_i32_0 = arith.constant 0 : i32
    return %arg0, %c0_i32 : i32, i32
  }
  func.func @transform_1(%arg0: i32) -> (i32, i32) {
    %c0_i32 = arith.constant 0 : i32
    %c0_i32_0 = arith.constant 0 : i32
    return %arg0, %c0_i32 : i32, i32
  }
  func.func @transform_2(%arg0: i32) -> (i32, i32) {
    %c0_i32 = arith.constant 0 : i32
    %c0_i32_0 = arith.constant 0 : i32
    %c0_i32_1 = arith.constant 0 : i32
    return %c0_i32, %c0_i32_0 : i32, i32
  }
  func.func @transform_3(%arg0: i32) -> (i32, i32) {
    %c0_i32 = arith.constant 0 : i32
    %c0_i32_0 = arith.constant 0 : i32
    return %arg0, %c0_i32 : i32, i32
  }
}

</mosaic_0001>

<llo_original>
// kernel: tpu_custom_call.1
$region0: #{tpu_custom_call.1}
  #allocation0 [shape = 'u32[]', space=smem, size = 0x4, offset = 0x4, fixed_abs, tag = 'smem constant byte address 0x4 - core index']
  #allocation1 [shape = 'u32[144,128]{1,0:T(1,128)}', space=vmem, size = 0x12000, scoped, tag = 'internal scratch']
  %s0 = inlined_call_operand.hbm [shape: f32[8,16], index: 0, kind: input, shape index: {}]
  %s1 = inlined_call_operand.hbm [shape: f32[8,128], index: 1, kind: input, shape index: {}]
  %s2 = inlined_call_operand.hbm [shape: f32[280,256], index: 2, kind: input, shape index: {}]
  %s3 = inlined_call_operand.hbm [shape: f32[8,128], index: 3, kind: output, shape index: {}]
  %s4 = sld [smem:[#allocation0]]
  $region34: #{tpu_custom_call.1} parent=0
    _
  %s6 = ssub.s32 1, %s4
  %s7 = scalar_select 0, %s6, %s4
  $region1: #{tpu_custom_call.1} parent=0
    #allocation2 [shape = 'u8[4096]{0}', space=vmem, size = 0x1000, scoped, tag = 'input window, operand 0, single buffered']
    #allocation3 [shape = 's32[1]{0}', space=sflag, size = 0x4, scoped, tag = 'scoped memory for tpu_custom_call.1']
    #allocation4 [shape = 's32[1]{0}', space=sflag, size = 0x4, scoped, tag = 'scoped memory for tpu_custom_call.1']
    #allocation5 [shape = 'u8[4096]{0}', space=vmem, size = 0x1000, scoped, tag = 'input window, operand 1, single buffered']
    #allocation6 [shape = 's32[1]{0}', space=sflag, size = 0x4, scoped, tag = 'scoped memory for tpu_custom_call.1']
    #allocation7 [shape = 'u8[286720]{0}', space=vmem, size = 0x46000, scoped, tag = 'input window, operand 2, single buffered']
    #allocation8 [shape = 'u8[4096]{0}', space=vmem, size = 0x1000, scoped, tag = 'output window, operand 0, single buffered']
    %8 = vsyncpa [#allocation3], 0
    %9 = vsyncpa [#allocation6], 0
    %10 = vsyncpa [#allocation4], 0
    // Predicated region
    $region2: #{tpu_custom_call.1} parent=1 // pred_check
      _
    $region3: #{tpu_custom_call.1} parent=1 // pred_check_branch
      %12 = sbr.rel (0) target = $region5
    $region4: #{tpu_custom_call.1} parent=1 // pred_region
      %s14 = ssub.s32 128, 128
      %15 = vsyncadd [#allocation3], %s14
      %s17 = sshll.u32 [#allocation2], 4
      %s18 = int_to_ptr.vmem [resolvable:$true] %s17
      %20 = dma.hbm_to_vmem [thread:$0]  %s0, 128, %s18, [#allocation3]
    $region5: #{tpu_custom_call.1} parent=1 // pred_fallthru
      _
    // Predicated region
    $region6: #{tpu_custom_call.1} parent=1 // pred_check
      _
    $region7: #{tpu_custom_call.1} parent=1 // pred_check_branch
      %22 = sbr.rel (0) target = $region9
    $region8: #{tpu_custom_call.1} parent=1 // pred_region
      %s24 = ssub.s32 128, 128
      %25 = vsyncadd [#allocation6], %s24
      %s27 = sshll.u32 [#allocation5], 4
      %s28 = int_to_ptr.vmem [resolvable:$true] %s27
      %30 = dma.hbm_to_vmem [thread:$0]  %s1, 128, %s28, [#allocation6]
    $region9: #{tpu_custom_call.1} parent=1 // pred_fallthru
      _
    // Predicated region
    $region10: #{tpu_custom_call.1} parent=1 // pred_check
      _
    $region11: #{tpu_custom_call.1} parent=1 // pred_check_branch
      %32 = sbr.rel (0) target = $region13
    $region12: #{tpu_custom_call.1} parent=1 // pred_region
      %s34 = ssub.s32 8960, 8960
      %35 = vsyncadd [#allocation6], %s34
      %s36 = sshll.u32 [#allocation7], 4
      %s37 = int_to_ptr.vmem [resolvable:$true] %s36
      %42 = dma.hbm_to_vmem [thread:$0]  %s2, 8960, %s37, [#allocation6], 256, 256, 16
    $region13: #{tpu_custom_call.1} parent=1 // pred_fallthru
      _
    // Predicated region
    $region14: #{tpu_custom_call.1} parent=1 // pred_check
      _
    $region15: #{tpu_custom_call.1} parent=1 // pred_check_branch
      %44 = sbr.rel (0) target = $region17
    $region16: #{tpu_custom_call.1} parent=1 // pred_region
      %45 = dma.done [#allocation3], 128
    $region17: #{tpu_custom_call.1} parent=1 // pred_fallthru
      _
    // Predicated region
    $region18: #{tpu_custom_call.1} parent=1 // pred_check
      _
    $region19: #{tpu_custom_call.1} parent=1 // pred_check_branch
      %47 = sbr.rel (0) target = $region21
    $region20: #{tpu_custom_call.1} parent=1 // pred_region
      %48 = dma.done [#allocation6], 128
    $region21: #{tpu_custom_call.1} parent=1 // pred_fallthru
      _
    // Predicated region
    $region22: #{tpu_custom_call.1} parent=1 // pred_check
      _
    $region23: #{tpu_custom_call.1} parent=1 // pred_check_branch
      %50 = sbr.rel (0) target = $region25
    $region24: #{tpu_custom_call.1} parent=1 // pred_region
      %51 = dma.done [#allocation6], 8960
    $region25: #{tpu_custom_call.1} parent=1 // pred_fallthru
      _
    %v52 = vld [vmem:[#allocation2] sm:$0xff]
    %v53 = vld [vmem:[#allocation5] sm:$0xff]
    %v54 = vld [vmem:[#allocation7] sm:$0xff]
    %v55 = vld [vmem:[#allocation7 + $0x8] sm:$0xff]
    %v56 = vld [vmem:[#allocation7 + $0x10] sm:$0xff]
    %v57 = vld [vmem:[#allocation7 + $0x18] sm:$0xff]
    %v58 = vld [vmem:[#allocation7 + $0x20] sm:$0xff]
    %v59 = vld [vmem:[#allocation7 + $0x30] sm:$0xff]
    %v60 = vld [vmem:[#allocation7 + $0x40] sm:$0xff]
    %v61 = vld [vmem:[#allocation7 + $0x50] sm:$0xff]
    %v62 = vld [vmem:[#allocation7 + $0x60] sm:$0xff]
    %v63 = vld [vmem:[#allocation7 + $0x70] sm:$0xff]
    %v64 = vld [vmem:[#allocation7 + $0x80] sm:$0xff]
    %v65 = vld [vmem:[#allocation7 + $0x90] sm:$0xff]
    %v66 = vld [vmem:[#allocation7 + $0xa0] sm:$0xff]
    %v67 = vld [vmem:[#allocation7 + $0xb0] sm:$0xff]
    %v68 = vld [vmem:[#allocation7 + $0xc0] sm:$0xff]
    %v69 = vld [vmem:[#allocation7 + $0xd0] sm:$0xff]
    %v70 = vld [vmem:[#allocation7 + $0xe0] sm:$0xff]
    %v71 = vld [vmem:[#allocation7 + $0xf0] sm:$0xff]
    %v72 = vld [vmem:[#allocation7 + $0x100] sm:$0xff]
    %v73 = vld [vmem:[#allocation7 + $0x110] sm:$0xff]
    %v74 = vld [vmem:[#allocation7 + $0x120] sm:$0xff]
    %v75 = vld [vmem:[#allocation7 + $0x130] sm:$0xff]
    %v76 = vld [vmem:[#allocation7 + $0x140] sm:$0xff]
    %v77 = vld [vmem:[#allocation7 + $0x150] sm:$0xff]
    %v78 = vld [vmem:[#allocation7 + $0x160] sm:$0xff]
    %v79 = vld [vmem:[#allocation7 + $0x170] sm:$0xff]
    %v80 = vld [vmem:[#allocation7 + $0x180] sm:$0xff]
    %v81 = vld [vmem:[#allocation7 + $0x190] sm:$0xff]
    %v82 = vld [vmem:[#allocation7 + $0x1a0] sm:$0xff]
    %v83 = vld [vmem:[#allocation7 + $0x1b0] sm:$0xff]
    %v84 = vld [vmem:[#allocation7 + $0x1c0] sm:$0xff]
    %v85 = vld [vmem:[#allocation7 + $0x1d0] sm:$0xff]
    %v86 = vld [vmem:[#allocation7 + $0x1e0] sm:$0xff]
    %v87 = vld [vmem:[#allocation7 + $0x1f0] sm:$0xff]
    %v88 = vld [vmem:[#allocation7 + $0x200] sm:$0xff]
    %v89 = vld [vmem:[#allocation7 + $0x210] sm:$0xff]
    %v90 = vld [vmem:[#allocation7 + $0x28] sm:$0xff]
    %v91 = vld [vmem:[#allocation7 + $0x38] sm:$0xff]
    %v92 = vld [vmem:[#allocation7 + $0x48] sm:$0xff]
    %v93 = vld [vmem:[#allocation7 + $0x58] sm:$0xff]
    %v94 = vld [vmem:[#allocation7 + $0x68] sm:$0xff]
    %v95 = vld [vmem:[#allocation7 + $0x78] sm:$0xff]
    %v96 = vld [vmem:[#allocation7 + $0x88] sm:$0xff]
    %v97 = vld [vmem:[#allocation7 + $0x98] sm:$0xff]
    %v98 = vld [vmem:[#allocation7 + $0xa8] sm:$0xff]
    %v99 = vld [vmem:[#allocation7 + $0xb8] sm:$0xff]
    %v100 = vld [vmem:[#allocation7 + $0xc8] sm:$0xff]
    %v101 = vld [vmem:[#allocation7 + $0xd8] sm:$0xff]
    %v102 = vld [vmem:[#allocation7 + $0xe8] sm:$0xff]
    %v103 = vld [vmem:[#allocation7 + $0xf8] sm:$0xff]
    %v104 = vld [vmem:[#allocation7 + $0x108] sm:$0xff]
    %v105 = vld [vmem:[#allocation7 + $0x118] sm:$0xff]
    %s106 = scalar_lea.vmem [#allocation7], 544
    %v107 = vld [vmem:[%s106] ss:$8 sm:$0x3]
    %v108 = vld [vmem:[#allocation7 + $0x221] ss:$0 sm:$0xff]
    %v109 = vld [vmem:[#allocation7 + $0x222] ss:$0 sm:$0xff]
    %v110 = vld [vmem:[#allocation7 + $0x223] ss:$0 sm:$0xff]
    %v112 = vlaneseq
    %v113 = vshrl.u32 %v112, 7
    %v114 = vsub.s32 0, %v113
    %v115 = vrot.slane %v107, %v114
    %v116 = vlaneseq
    %v117 = vshrl.u32 %v116, 7
    %v118 = vsub.s32 1, %v117
    %v119 = vrot.slane %v107, %v118
    %vm122 = vcmask 130048
    %v124 = vsel %vm122, %v52, 0
    %126 = vmatprep.subr.mxu0 0.0
    %127 = vmatpush1.msra.mxu0 0.0
    %128 = vmatprep.subr.mxu0 0.0
    %129 = vmatpush1.msra.mxu0 0.0
    %130 = vmatprep.subr.mxu0 0.0
    %131 = vmatpush1.msra.mxu0 0.0
    %132 = vmatprep.subr.mxu0 0.0
    %133 = vmatpush1.msra.mxu0 0.0
    %134 = vmatprep.subr.mxu0 0.0
    %135 = vmatpush1.msra.mxu0 0.0
    %136 = vmatprep.subr.mxu0 0.0
    %137 = vmatpush1.msra.mxu0 0.0
    %138 = vmatprep.subr.mxu0 0.0
    %139 = vmatpush1.msra.mxu0 0.0
    %140 = vmatprep.subr.mxu0 0.0
    %141 = vmatpush1.msra.mxu0 0.0
    %142 = vmatprep.subr.mxu0 0.0
    %143 = vmatpush1.msra.mxu0 0.0
    %144 = vmatprep.subr.mxu0 0.0
    %145 = vmatpush1.msra.mxu0 0.0
    %146 = vmatprep.subr.mxu0 0.0
    %147 = vmatpush1.msra.mxu0 0.0
    %148 = vmatprep.subr.mxu0 0.0
    %149 = vmatpush1.msra.mxu0 0.0
    %150 = vmatprep.subr.mxu0 0.0
    %151 = vmatpush1.msra.mxu0 0.0
    %152 = vmatprep.subr.mxu0 0.0
    %153 = vmatpush1.msra.mxu0 0.0
    %154 = vmatprep.subr.mxu0 %v57
    %155 = vmatpush1.msra.mxu0 %v56
    %156 = vmatprep.subr.mxu0 %v55
    %157 = vmatpush1.msra.mxu0 %v54
    %158 = vmatprep.subr.mxu0 0.0
    %159 = vmatpush2.msra.mxu0 0.0
    %160 = vmatprep.subr.mxu0 0.0
    %161 = vmatpush2.msra.mxu0 0.0
    %162 = vmatprep.subr.mxu0 0.0
    %163 = vmatpush2.msra.mxu0 0.0
    %164 = vmatprep.subr.mxu0 0.0
    %165 = vmatpush2.msra.mxu0 0.0
    %166 = vmatprep.subr.mxu0 0.0
    %167 = vmatpush2.msra.mxu0 0.0
    %168 = vmatprep.subr.mxu0 0.0
    %169 = vmatpush2.msra.mxu0 0.0
    %170 = vmatprep.subr.mxu0 0.0
    %171 = vmatpush2.msra.mxu0 0.0
    %172 = vmatprep.subr.mxu0 0.0
    %173 = vmatpush2.msra.mxu0 0.0
    %174 = vmatprep.subr.mxu0 0.0
    %175 = vmatpush2.msra.mxu0 0.0
    %176 = vmatprep.subr.mxu0 0.0
    %177 = vmatpush2.msra.mxu0 0.0
    %178 = vmatprep.subr.mxu0 0.0
    %179 = vmatpush2.msra.mxu0 0.0
    %180 = vmatprep.subr.mxu0 0.0
    %181 = vmatpush2.msra.mxu0 0.0
    %182 = vmatprep.subr.mxu0 0.0
    %183 = vmatpush2.msra.mxu0 0.0
    %184 = vmatprep.subr.mxu0 0.0
    %185 = vmatpush2.msra.mxu0 0.0
    %186 = vmatprep.subr.mxu0 0.0
    %187 = vmatpush2.msra.mxu0 0.0
    %188 = vmatprep.subr.mxu0 0.0
    %189 = vmatpush2.msra.mxu0 0.0
    %190 = vmatprep.mubr.f32.mxu0 0.0
    %191 = vmatmul.mubr.f32.gmra.mxu0 %v124
    %v192 = vpop.f32.mrf.mxu0
    %v193 = vadd.f32 %v115, %v192
    %v194 = vpop.f32.mrf.mxu0
    %v195 = vadd.f32 %v119, %v194
    %196 = vdwg.mxu0
    %v197 = vmax.f32 %v193, 0.0
    %v198 = vmax.f32 %v195, 0.0
    %199 = vmatprep.subr.mxu0 0.0
    %200 = vmatpush1.msra.mxu0 %v73
    %201 = vmatprep.subr.mxu0 0.0
    %202 = vmatpush1.msra.mxu0 %v72
    %203 = vmatprep.subr.mxu0 0.0
    %204 = vmatpush1.msra.mxu0 %v71
    %205 = vmatprep.subr.mxu0 0.0
    %206 = vmatpush1.msra.mxu0 %v70
    %207 = vmatprep.subr.mxu0 0.0
    %208 = vmatpush1.msra.mxu0 %v69
    %209 = vmatprep.subr.mxu0 0.0
    %210 = vmatpush1.msra.mxu0 %v68
    %211 = vmatprep.subr.mxu0 0.0
    %212 = vmatpush1.msra.mxu0 %v67
    %213 = vmatprep.subr.mxu0 0.0
    %214 = vmatpush1.msra.mxu0 %v66
    %215 = vmatprep.subr.mxu0 0.0
    %216 = vmatpush1.msra.mxu0 %v65
    %217 = vmatprep.subr.mxu0 0.0
    %218 = vmatpush1.msra.mxu0 %v64
    %219 = vmatprep.subr.mxu0 0.0
    %220 = vmatpush1.msra.mxu0 %v63
    %221 = vmatprep.subr.mxu0 0.0
    %222 = vmatpush1.msra.mxu0 %v62
    %223 = vmatprep.subr.mxu0 0.0
    %224 = vmatpush1.msra.mxu0 %v61
    %225 = vmatprep.subr.mxu0 0.0
    %226 = vmatpush1.msra.mxu0 %v60
    %227 = vmatprep.subr.mxu0 0.0
    %228 = vmatpush1.msra.mxu0 %v59
    %229 = vmatprep.subr.mxu0 0.0
    %230 = vmatpush1.msra.mxu0 %v58
    %231 = vmatprep.subr.mxu0 0.0
    %232 = vmatpush2.msra.mxu0 %v89
    %233 = vmatprep.subr.mxu0 0.0
    %234 = vmatpush2.msra.mxu0 %v88
    %235 = vmatprep.subr.mxu0 0.0
    %236 = vmatpush2.msra.mxu0 %v87
    %237 = vmatprep.subr.mxu0 0.0
    %238 = vmatpush2.msra.mxu0 %v86
    %239 = vmatprep.subr.mxu0 0.0
    %240 = vmatpush2.msra.mxu0 %v85
    %241 = vmatprep.subr.mxu0 0.0
    %242 = vmatpush2.msra.mxu0 %v84
    %243 = vmatprep.subr.mxu0 0.0
    %244 = vmatpush2.msra.mxu0 %v83
    %245 = vmatprep.subr.mxu0 0.0
    %246 = vmatpush2.msra.mxu0 %v82
    %247 = vmatprep.subr.mxu0 0.0
    %248 = vmatpush2.msra.mxu0 %v81
    %249 = vmatprep.subr.mxu0 0.0
    %250 = vmatpush2.msra.mxu0 %v80
    %251 = vmatprep.subr.mxu0 0.0
    %252 = vmatpush2.msra.mxu0 %v79
    %253 = vmatprep.subr.mxu0 0.0
    %254 = vmatpush2.msra.mxu0 %v78
    %255 = vmatprep.subr.mxu0 0.0
    %256 = vmatpush2.msra.mxu0 %v77
    %257 = vmatprep.subr.mxu0 0.0
    %258 = vmatpush2.msra.mxu0 %v76
    %259 = vmatprep.subr.mxu0 0.0
    %260 = vmatpush2.msra.mxu0 %v75
    %261 = vmatprep.subr.mxu0 0.0
    %262 = vmatpush2.msra.mxu0 %v74
    %263 = vmatprep.mubr.f32.mxu0 %v198
    %264 = vmatmul.mubr.f32.gmra.mxu0 %v197
    %v265 = vpop.f32.mrf.mxu0
    %v266 = vadd.f32 %v108, %v265
    %v267 = vpop.f32.mrf.mxu0
    %268 = vdwg.mxu0
    %v269 = vmax.f32 %v266, 0.0
    %270 = vmatprep.subr.mxu0 0.0
    %271 = vmatpush1.msra.mxu0 %v105
    %272 = vmatprep.subr.mxu0 0.0
    %273 = vmatpush1.msra.mxu0 %v104
    %274 = vmatprep.subr.mxu0 0.0
    %275 = vmatpush1.msra.mxu0 %v103
    %276 = vmatprep.subr.mxu0 0.0
    %277 = vmatpush1.msra.mxu0 %v102
    %278 = vmatprep.subr.mxu0 0.0
    %279 = vmatpush1.msra.mxu0 %v101
    %280 = vmatprep.subr.mxu0 0.0
    %281 = vmatpush1.msra.mxu0 %v100
    %282 = vmatprep.subr.mxu0 0.0
    %283 = vmatpush1.msra.mxu0 %v99
    %284 = vmatprep.subr.mxu0 0.0
    %285 = vmatpush1.msra.mxu0 %v98
    %286 = vmatprep.subr.mxu0 0.0
    %287 = vmatpush1.msra.mxu0 %v97
    %288 = vmatprep.subr.mxu0 0.0
    %289 = vmatpush1.msra.mxu0 %v96
    %290 = vmatprep.subr.mxu0 0.0
    %291 = vmatpush1.msra.mxu0 %v95
    %292 = vmatprep.subr.mxu0 0.0
    %293 = vmatpush1.msra.mxu0 %v94
    %294 = vmatprep.subr.mxu0 0.0
    %295 = vmatpush1.msra.mxu0 %v93
    %296 = vmatprep.subr.mxu0 0.0
    %297 = vmatpush1.msra.mxu0 %v92
    %298 = vmatprep.subr.mxu0 0.0
    %299 = vmatpush1.msra.mxu0 %v91
    %300 = vmatprep.subr.mxu0 0.0
    %301 = vmatpush1.msra.mxu0 %v90
    %302 = vmatprep.subr.mxu0 0.0
    %303 = vmatpush2.msra.mxu0 0.0
    %304 = vmatprep.subr.mxu0 0.0
    %305 = vmatpush2.msra.mxu0 0.0
    %306 = vmatprep.subr.mxu0 0.0
    %307 = vmatpush2.msra.mxu0 0.0
    %308 = vmatprep.subr.mxu0 0.0
    %309 = vmatpush2.msra.mxu0 0.0
    %310 = vmatprep.subr.mxu0 0.0
    %311 = vmatpush2.msra.mxu0 0.0
    %312 = vmatprep.subr.mxu0 0.0
    %313 = vmatpush2.msra.mxu0 0.0
    %314 = vmatprep.subr.mxu0 0.0
    %315 = vmatpush2.msra.mxu0 0.0
    %316 = vmatprep.subr.mxu0 0.0
    %317 = vmatpush2.msra.mxu0 0.0
    %318 = vmatprep.subr.mxu0 0.0
    %319 = vmatpush2.msra.mxu0 0.0
    %320 = vmatprep.subr.mxu0 0.0
    %321 = vmatpush2.msra.mxu0 0.0
    %322 = vmatprep.subr.mxu0 0.0
    %323 = vmatpush2.msra.mxu0 0.0
    %324 = vmatprep.subr.mxu0 0.0
    %325 = vmatpush2.msra.mxu0 0.0
    %326 = vmatprep.subr.mxu0 0.0
    %327 = vmatpush2.msra.mxu0 0.0
    %328 = vmatprep.subr.mxu0 0.0
    %329 = vmatpush2.msra.mxu0 0.0
    %330 = vmatprep.subr.mxu0 0.0
    %331 = vmatpush2.msra.mxu0 0.0
    %332 = vmatprep.subr.mxu0 0.0
    %333 = vmatpush2.msra.mxu0 0.0
    %334 = vmatprep.mubr.f32.mxu0 0.0
    %335 = vmatmul.mubr.f32.gmra.mxu0 %v269
    %v336 = vpop.f32.mrf.mxu0
    %v337 = vadd.f32 %v109, %v336
    %v338 = vpop.f32.mrf.mxu0
    %339 = vdwg.mxu0
    %v340 = vmax.f32 %v110, 0.0
    %v341 = vand.u32 2147483647, %v110
    %v342 = vsub.f32 0.0, %v341
    %v343 = vmul.f32 %v342, 1.442695
    %v344 = vpow.pop %v343
    %v345 = vadd.f32 %v344, 1.0
    %v346 = vlog2.pop %v345
    %v347 = vmul.f32 %v346, 0.6931472
    %v348 = vmul.f32 -0.5, %v344
    %v349 = vadd.f32 %v348, 1.0
    %v350 = vmul.f32 %v349, %v344
    %v351 = vand.u32 2147483647, %v344
    %vm352 = vcmp.lt.f32.partialorder %v351, 0.0004427343
    %v353 = vsel %vm352, %v350, %v347
    %v354 = vadd.f32 %v340, %v353
    %v355 = vtanh.pop %v337
    %v356 = vmul.f32 %v354, %v53
    %v357 = vadd.f32 %v355, %v356
    %v358 = vlaneseq
    %v359 = vand.u32 %v358, 127
    %vm360 = vcmp.lt.s32.totalorder %v359, 4
    %v361 = vmul.f32 %v53, -0.5
    %v362 = vmul.f32 %v361, %v53
    %v363 = vlog2.pop %v354
    %v364 = vmul.f32 %v363, 0.6931472
    %v365 = vsub.f32 %v362, %v364
    %v366 = vsub.f32 %v365, 0.9189385
    %v367 = vsel %vm360, %v366, 0.0
    %368 = vadd.xlane.f32.xlu0 %v367
    %v369 = vpop.xlane.xlu0 %368
    %vm370 = vcmp.eq.s32.totalorder %v359, 4
    %v371 = vsel %vm370, %v369, %v337
    %v372 = vsel %vm360, %v357, %v371
    %373 = vst [vmem:[#allocation8] sm:$0xff] %v372
    // Predicated region
    $region26: #{tpu_custom_call.1} parent=1 // pred_check
      _
    $region27: #{tpu_custom_call.1} parent=1 // pred_check_branch
      %375 = sbr.rel (0) target = $region29
    $region28: #{tpu_custom_call.1} parent=1 // pred_region
      %s377 = ssub.s32 128, 128
      %378 = vsyncadd [#allocation4], %s377
      %s380 = sshll.u32 [#allocation8], 4
      %s381 = int_to_ptr.vmem [resolvable:$true] %s380
      %383 = dma.vmem_to_hbm [thread:$0]  %s381, 128, %s3, [#allocation4]
    $region29: #{tpu_custom_call.1} parent=1 // pred_fallthru
      _
    // Predicated region
    $region30: #{tpu_custom_call.1} parent=1 // pred_check
      _
    $region31: #{tpu_custom_call.1} parent=1 // pred_check_branch
      %385 = sbr.rel (0) target = $region33
    $region32: #{tpu_custom_call.1} parent=1 // pred_region
      %386 = dma.done [#allocation4], 128
    $region33: #{tpu_custom_call.1} parent=1 // pred_fallthru
      _
    %387 = vsyncpa [#allocation3], 1
    %388 = vsyncpa [#allocation6], 1
    %389 = vsyncpa [#allocation4], 1

</llo_original>
